<compile_context>
chip_gen: v6e
topology: v6e:2x2x1
jax: 0.10.0
libtpu: 0.0.40
codegen_flags: <defaults>
</compile_context>

<pallas_src>
import functools

import jax
import jax.numpy as jnp
from jax import lax
from jax.experimental import pallas as pl
from jax.experimental.pallas import tpu as pltpu


def self_attention_kernel(x_ref, gamma_ref, beta_ref,
                          wq_ref, wk_ref, wv_ref, wo_ref, bo_ref,
                          *refs, with_scores, inv_temperature, eps):
    if with_scores:
        out_ref, attn_ref, xln_ref = refs
    else:
        out_ref, xln_ref = refs
        attn_ref = None

    h = pl.program_id(1)
    bt, n, c = x_ref.shape

    # ---- LayerNorm once per batch block (head axis is innermost) ----
    @pl.when(h == 0)
    def _():
        x = x_ref[...]                                           # (bt, N, C) f32
        mean = jnp.mean(x, axis=-1, keepdims=True)
        var = jnp.mean((x - mean) ** 2, axis=-1, keepdims=True)  # biased, like torch
        x_ln = (x - mean) * lax.rsqrt(var + eps)
        x_ln = x_ln * gamma_ref[...] + beta_ref[...]
        xln_ref[...] = x_ln.astype(jnp.bfloat16)
        # initialize the output accumulator with the o_proj bias
        out_ref[...] = jnp.broadcast_to(bo_ref[...], out_ref.shape).astype(out_ref.dtype)

    x_ln = xln_ref[...].reshape(bt * n, c)                       # bf16 (bt*N, C)
    wq = wq_ref[0]                                               # (C, dqk) bf16
    wk = wk_ref[0]                                               # (C, dqk) bf16
    wv = wv_ref[0]                                               # (C, dv)  bf16
    wo = wo_ref[0]                                               # (dv, C)  bf16

    # per-head projections: bf16 operands, f32 MXU accumulation
    q = jnp.dot(x_ln, wq, preferred_element_type=jnp.float32)    # (bt*N, dqk)
    k = jnp.dot(x_ln, wk, preferred_element_type=jnp.float32)
    v = jnp.dot(x_ln, wv, preferred_element_type=jnp.float32)

    dqk = q.shape[-1]
    dv = v.shape[-1]
    # fold 1/temperature into q once (N x dqk mul instead of an N x N divide)
    qb = (q * inv_temperature).astype(jnp.bfloat16).reshape(bt, n, dqk)
    kb = k.astype(jnp.bfloat16).reshape(bt, n, dqk)
    vb = v.astype(jnp.bfloat16).reshape(bt, n, dv)

    # scores: contract last dims, batch over the batch-block dim (no k.T)
    s = lax.dot_general(qb, kb,
                        dimension_numbers=(((2,), (2,)), ((0,), (0,))),
                        preferred_element_type=jnp.float32)      # (bt, N, N)
    s = s - jnp.max(s, axis=-1, keepdims=True)                   # stable softmax
    p = jnp.exp(s)
    p = p * pl.reciprocal(jnp.sum(p, axis=-1, keepdims=True), approx=True)

    if with_scores:
        attn_ref[...] = p.reshape(bt, 1, n, n)                   # pre-dropout softmax
    # TODO(synk): attention-map dropout is identity in inference mode.

    o_h = lax.dot_general(p.astype(jnp.bfloat16), vb,
                          dimension_numbers=(((2,), (1,)), ((0,), (0,))),
                          preferred_element_type=jnp.float32)    # (bt, N, dv)

    # accumulate this head's slice of the output projection (no concatenation)
    out_ref[...] += jnp.dot(o_h.reshape(bt * n, dv).astype(jnp.bfloat16), wo,
                            preferred_element_type=jnp.float32).reshape(bt, n, c)


def _pick_batch_block(B, N):
    """Largest divisor of B keeping bt*N <= ~256 rows: fills the MXU M dim at
    small N without blowing up the (bt, N, N) score block at large N."""
    bt = 1
    for cand in range(1, B + 1):
        if B % cand == 0 and cand * N <= max(256, N):
            bt = cand
    return bt


def self_attention(x, params, *, num_heads, eps=1e-5, return_scores=True,
                   batch_block=None):
    """x: (B, N, C) f32.

    params = (gamma (1,C), beta (1,C), wq_t (C,QK), wk_t (C,QK), wv_t (C,V),
              wo_t (V,C), bo (1,C))  -- linear weights pre-transposed to (in, out).

    Returns (out (B,N,C), attention_scores (B*H,N,N)) if return_scores else out.
    """
    gamma, beta, wq_t, wk_t, wv_t, wo_t, bo = params
    B, N, C = x.shape
    H = num_heads
    QK = wq_t.shape[1]
    V = wv_t.shape[1]
    assert QK % H == 0 and V % H == 0, "projection dims must be divisible by num_heads"
    dqk, dv = QK // H, V // H
    inv_temperature = 1.0 / float(dqk ** 0.5)

    # Head-major, bf16 weights: each head's block is a full (C,dqk)/(dv,C) tile.
    wq_h = wq_t.reshape(C, H, dqk).transpose(1, 0, 2).astype(jnp.bfloat16)
    wk_h = wk_t.reshape(C, H, dqk).transpose(1, 0, 2).astype(jnp.bfloat16)
    wv_h = wv_t.reshape(C, H, dv).transpose(1, 0, 2).astype(jnp.bfloat16)
    wo_h = wo_t.reshape(H, dv, C).astype(jnp.bfloat16)

    bt = batch_block if batch_block is not None else _pick_batch_block(B, N)
    assert B % bt == 0

    kernel = functools.partial(self_attention_kernel,
                               with_scores=return_scores,
                               inv_temperature=inv_temperature,
                               eps=eps)

    in_specs = [
        pl.BlockSpec((bt, N, C), lambda i, h: (i, 0, 0)),        # x
        pl.BlockSpec((1, C), lambda i, h: (0, 0)),               # gamma
        pl.BlockSpec((1, C), lambda i, h: (0, 0)),               # beta
        pl.BlockSpec((1, C, dqk), lambda i, h: (h, 0, 0)),       # Wq (head h)
        pl.BlockSpec((1, C, dqk), lambda i, h: (h, 0, 0)),       # Wk (head h)
        pl.BlockSpec((1, C, dv), lambda i, h: (h, 0, 0)),        # Wv (head h)
        pl.BlockSpec((1, dv, C), lambda i, h: (h, 0, 0)),        # Wo (head h)
        pl.BlockSpec((1, C), lambda i, h: (0, 0)),               # o_proj bias
    ]
    out_spec_o = pl.BlockSpec((bt, N, C), lambda i, h: (i, 0, 0))
    out_sd_o = jax.ShapeDtypeStruct((B, N, C), jnp.float32)

    if return_scores:
        out_shape = (out_sd_o, jax.ShapeDtypeStruct((B, H, N, N), jnp.float32))
        out_specs = (out_spec_o,
                     pl.BlockSpec((bt, 1, N, N), lambda i, h: (i, h, 0, 0)))
    else:
        out_shape = out_sd_o
        out_specs = out_spec_o

    result = pl.pallas_call(
        kernel,
        out_shape=out_shape,
        grid=(B // bt, H),
        in_specs=in_specs,
        out_specs=out_specs,
        scratch_shapes=[pltpu.VMEM((bt, N, C), jnp.bfloat16)],   # cached LayerNorm out
        compiler_params=pltpu.CompilerParams(
            dimension_semantics=("parallel", "arbitrary")),
    )(x, gamma, beta, wq_h, wk_h, wv_h, wo_h, bo)

    if return_scores:
        out, attn = result
        return out, attn.reshape(B * H, N, N)
    return result


def reference(x, params, *, num_heads, eps=1e-5):
    """Pure-JAX reference of the PyTorch forward (inference mode)."""
    gamma, beta, wq_t, wk_t, wv_t, wo_t, bo = params
    B, N, C = x.shape
    mean = jnp.mean(x, axis=-1, keepdims=True)
    var = jnp.mean((x - mean) ** 2, axis=-1, keepdims=True)
    x_ln = (x - mean) / jnp.sqrt(var + eps) * gamma + beta
    q = x_ln @ wq_t
    k = x_ln @ wk_t
    v = x_ln @ wv_t

    def split(t):
        d = t.shape[-1] // num_heads
        return t.reshape(B, N, num_heads, d).transpose(0, 2, 1, 3).reshape(B * num_heads, N, d)

    qh, kh, vh = split(q), split(k), split(v)
    temperature = (q.shape[-1] // num_heads) ** 0.5
    att = jnp.einsum('bic,bjc->bij', qh, kh) / temperature
    scores = jax.nn.softmax(att, axis=-1)
    oh = jnp.einsum('bij,bjc->bic', scores, vh)
    d = oh.shape[-1]
    o = oh.reshape(B, num_heads, N, d).transpose(0, 2, 1, 3).reshape(B, N, num_heads * d)
    return o @ wo_t + bo, scores


if __name__ == "__main__":
    # Small shapes consistent with the module
    B, N, C = 2, 8, 32           # batch, seq, num_channels
    num_heads = 4
    num_qk_proj = 32
    num_v_proj = 32

    key = jax.random.PRNGKey(0)
    kx, kg, kb, kq, kk, kv, ko, kob = jax.random.split(key, 8)

    x = jax.random.normal(kx, (B, N, C), dtype=jnp.float32)

    # Deterministic parameter init (weights stored pre-transposed as (in, out)).
    gamma = 1.0 + 0.01 * jax.random.normal(kg, (1, C), dtype=jnp.float32)
    beta = 0.01 * jax.random.normal(kb, (1, C), dtype=jnp.float32)
    wq_t = 0.1 * jax.random.normal(kq, (C, num_qk_proj), dtype=jnp.float32)
    wk_t = 0.1 * jax.random.normal(kk, (C, num_qk_proj), dtype=jnp.float32)
    wv_t = 0.1 * jax.random.normal(kv, (C, num_v_proj), dtype=jnp.float32)
    wo_t = 0.1 * jax.random.normal(ko, (num_v_proj, C), dtype=jnp.float32)
    bo = 0.01 * jax.random.normal(kob, (1, C), dtype=jnp.float32)

    params = (gamma, beta, wq_t, wk_t, wv_t, wo_t, bo)

    out, scores = self_attention(x, params, num_heads=num_heads)
    out = jax.block_until_ready(out)
    scores = jax.block_until_ready(scores)

    out_ref, scores_ref = reference(x, params, num_heads=num_heads)
    assert out.shape == (B, N, C)
    assert scores.shape == (B * num_heads, N, N)
    # bf16 MXU operands + approx reciprocal -> slightly looser tolerance than pure f32.
    assert jnp.allclose(out, out_ref, atol=2e-2, rtol=2e-2), \
        float(jnp.max(jnp.abs(out - out_ref)))
    assert jnp.allclose(scores, scores_ref, atol=1e-2, rtol=1e-2), \
        float(jnp.max(jnp.abs(scores - scores_ref)))

    # out-only path (skips the B*H*N^2 attention-score writeback entirely)
    out_only = jax.block_until_ready(
        self_attention(x, params, num_heads=num_heads, return_scores=False))
    assert jnp.allclose(out_only, out_ref, atol=2e-2, rtol=2e-2)

    print("KERNEL_OK")
</pallas_src>

<mosaic_0001>
module attributes {stable_mosaic.version = 11 : i64} {
  func.func @self_attention_kernel(%arg0: i32, %arg1: i32, %arg2: memref<2x8x32xf32, #tpu.memory_space<vmem>>, %arg3: memref<1x32xf32, #tpu.memory_space<vmem>>, %arg4: memref<1x32xf32, #tpu.memory_space<vmem>>, %arg5: memref<1x32x8xbf16, #tpu.memory_space<vmem>>, %arg6: memref<1x32x8xbf16, #tpu.memory_space<vmem>>, %arg7: memref<1x32x8xbf16, #tpu.memory_space<vmem>>, %arg8: memref<1x8x32xbf16, #tpu.memory_space<vmem>>, %arg9: memref<1x32xf32, #tpu.memory_space<vmem>>, %arg10: memref<2x8x32xf32, #tpu.memory_space<vmem>>, %arg11: memref<2x1x8x8xf32, #tpu.memory_space<vmem>>, %arg12: memref<2x8x32xbf16, #tpu.memory_space<vmem>>) attributes {dimension_semantics = [#tpu.dimension_semantics<parallel>, #tpu.dimension_semantics<arbitrary>], iteration_bounds = array<i64: 1, 4>, scalar_prefetch = 0 : i64, scratch_operands = 1 : i64, tpu.core_type = #tpu.core_type<tc>, window_params = [{transform_indices = @transform_0, window_bounds = array<i64: 2, 8, 32>}, {pipeline_mode = #tpu.pipeline_mode<synchronous>, transform_indices = @transform_1, window_bounds = array<i64: 1, 32>}, {pipeline_mode = #tpu.pipeline_mode<synchronous>, transform_indices = @transform_2, window_bounds = array<i64: 1, 32>}, {transform_indices = @transform_3, window_bounds = array<i64: 1, 32, 8>}, {transform_indices = @transform_4, window_bounds = array<i64: 1, 32, 8>}, {transform_indices = @transform_5, window_bounds = array<i64: 1, 32, 8>}, {transform_indices = @transform_6, window_bounds = array<i64: 1, 8, 32>}, {pipeline_mode = #tpu.pipeline_mode<synchronous>, transform_indices = @transform_7, window_bounds = array<i64: 1, 32>}, {transform_indices = @transform_8, window_bounds = array<i64: 2, 8, 32>}, {transform_indices = @transform_9, window_bounds = array<i64: 2, 1, 8, 8>}]} {
    %c0_i32 = arith.constant 0 : i32
    %0 = arith.cmpi eq, %arg1, %c0_i32 : i32
    %1 = arith.extui %0 : i1 to i32
    %c0_i32_0 = arith.constant 0 : i32
    %2 = arith.cmpi ne, %1, %c0_i32_0 : i32
    scf.if %2 {
      %c0_33 = arith.constant 0 : index
      %c0_34 = arith.constant 0 : index
      %c0_35 = arith.constant 0 : index
      %46 = vector.load %arg2[%c0_33, %c0_34, %c0_35] : memref<2x8x32xf32, #tpu.memory_space<vmem>>, vector<2x8x32xf32>
      %cst_36 = arith.constant dense<0.000000e+00> : vector<2x8xf32>
      %47 = vector.multi_reduction <add>, %46, %cst_36 [2] : vector<2x8x32xf32> to vector<2x8xf32>
      %48 = vector.shape_cast %47 : vector<2x8xf32> to vector<2x8x1xf32>
      %cst_37 = arith.constant 3.200000e+01 : f32
      %49 = vector.broadcast %cst_37 : f32 to vector<2x8x1xf32>
      %50 = arith.divf %48, %49 : vector<2x8x1xf32>
      %51 = vector.broadcast %50 : vector<2x8x1xf32> to vector<2x8x32xf32>
      %52 = arith.subf %46, %51 : vector<2x8x32xf32>
      %53 = arith.mulf %52, %52 : vector<2x8x32xf32>
      %cst_38 = arith.constant dense<0.000000e+00> : vector<2x8xf32>
      %54 = vector.multi_reduction <add>, %53, %cst_38 [2] : vector<2x8x32xf32> to vector<2x8xf32>
      %55 = vector.shape_cast %54 : vector<2x8xf32> to vector<2x8x1xf32>
      %cst_39 = arith.constant 3.200000e+01 : f32
      %56 = vector.broadcast %cst_39 : f32 to vector<2x8x1xf32>
      %57 = arith.divf %55, %56 : vector<2x8x1xf32>
      %58 = vector.broadcast %50 : vector<2x8x1xf32> to vector<2x8x32xf32>
      %59 = arith.subf %46, %58 : vector<2x8x32xf32>
      %cst_40 = arith.constant 9.99999974E-6 : f32
      %60 = vector.broadcast %cst_40 : f32 to vector<2x8x1xf32>
      %61 = arith.addf %57, %60 : vector<2x8x1xf32>
      %62 = math.rsqrt %61 : vector<2x8x1xf32>
      %63 = vector.broadcast %62 : vector<2x8x1xf32> to vector<2x8x32xf32>
      %64 = arith.mulf %59, %63 : vector<2x8x32xf32>
      %c0_41 = arith.constant 0 : index
      %c0_42 = arith.constant 0 : index
      %65 = vector.load %arg3[%c0_41, %c0_42] : memref<1x32xf32, #tpu.memory_space<vmem>>, vector<1x32xf32>
      %66 = vector.shape_cast %65 : vector<1x32xf32> to vector<1x1x32xf32>
      %67 = vector.broadcast %66 : vector<1x1x32xf32> to vector<2x8x32xf32>
      %68 = arith.mulf %64, %67 : vector<2x8x32xf32>
      %c0_43 = arith.constant 0 : index
      %c0_44 = arith.constant 0 : index
      %69 = vector.load %arg4[%c0_43, %c0_44] : memref<1x32xf32, #tpu.memory_space<vmem>>, vector<1x32xf32>
      %70 = vector.shape_cast %69 : vector<1x32xf32> to vector<1x1x32xf32>
      %71 = vector.broadcast %70 : vector<1x1x32xf32> to vector<2x8x32xf32>
      %72 = arith.addf %68, %71 : vector<2x8x32xf32>
      %73 = arith.truncf %72 : vector<2x8x32xf32> to vector<2x8x32xbf16>
      %c0_45 = arith.constant 0 : index
      %c0_46 = arith.constant 0 : index
      %c0_47 = arith.constant 0 : index
      %74 = vector.load %arg12[%c0_45, %c0_46, %c0_47] : memref<2x8x32xbf16, #tpu.memory_space<vmem>>, vector<2x8x32xbf16>
      tpu.vector_store %arg12[%c0_45, %c0_46, %c0_47], %73 {strides = array<i32>} : memref<2x8x32xbf16, #tpu.memory_space<vmem>>, vector<2x8x32xbf16>,
      %c0_48 = arith.constant 0 : index
      %c0_49 = arith.constant 0 : index
      %75 = vector.load %arg9[%c0_48, %c0_49] : memref<1x32xf32, #tpu.memory_space<vmem>>, vector<1x32xf32>
      %76 = vector.shape_cast %75 : vector<1x32xf32> to vector<1x1x32xf32>
      %77 = vector.broadcast %76 : vector<1x1x32xf32> to vector<2x8x32xf32>
      %c0_50 = arith.constant 0 : index
      %c0_51 = arith.constant 0 : index
      %c0_52 = arith.constant 0 : index
      %78 = vector.load %arg10[%c0_50, %c0_51, %c0_52] : memref<2x8x32xf32, #tpu.memory_space<vmem>>, vector<2x8x32xf32>
      tpu.vector_store %arg10[%c0_50, %c0_51, %c0_52], %77 {strides = array<i32>} : memref<2x8x32xf32, #tpu.memory_space<vmem>>, vector<2x8x32xf32>,
    } else {
    }
    %c0 = arith.constant 0 : index
    %c0_1 = arith.constant 0 : index
    %c0_2 = arith.constant 0 : index
    %3 = vector.load %arg12[%c0, %c0_1, %c0_2] : memref<2x8x32xbf16, #tpu.memory_space<vmem>>, vector<2x8x32xbf16>
    %4 = vector.shape_cast %3 : vector<2x8x32xbf16> to vector<16x32xbf16>
    %c0_3 = arith.constant 0 : index
    %c0_4 = arith.constant 0 : index
    %c0_5 = arith.constant 0 : index
    %5 = vector.load %arg5[%c0_3, %c0_4, %c0_5] : memref<1x32x8xbf16, #tpu.memory_space<vmem>>, vector<1x32x8xbf16>
    %6 = vector.shape_cast %5 : vector<1x32x8xbf16> to vector<32x8xbf16>
    %c0_6 = arith.constant 0 : index
    %c0_7 = arith.constant 0 : index
    %c0_8 = arith.constant 0 : index
    %7 = vector.load %arg6[%c0_6, %c0_7, %c0_8] : memref<1x32x8xbf16, #tpu.memory_space<vmem>>, vector<1x32x8xbf16>
    %8 = vector.shape_cast %7 : vector<1x32x8xbf16> to vector<32x8xbf16>
    %c0_9 = arith.constant 0 : index
    %c0_10 = arith.constant 0 : index
    %c0_11 = arith.constant 0 : index
    %9 = vector.load %arg7[%c0_9, %c0_10, %c0_11] : memref<1x32x8xbf16, #tpu.memory_space<vmem>>, vector<1x32x8xbf16>
    %10 = vector.shape_cast %9 : vector<1x32x8xbf16> to vector<32x8xbf16>
    %c0_12 = arith.constant 0 : index
    %c0_13 = arith.constant 0 : index
    %c0_14 = arith.constant 0 : index
    %11 = vector.load %arg8[%c0_12, %c0_13, %c0_14] : memref<1x8x32xbf16, #tpu.memory_space<vmem>>, vector<1x8x32xbf16>
    %12 = vector.shape_cast %11 : vector<1x8x32xbf16> to vector<8x32xbf16>
    %cst = arith.constant dense<0.000000e+00> : vector<16x8xf32>
    %13 = tpu.matmul %4, %6, %cst {dimension_numbers = #tpu.dot_dimension_numbers<[1], [0], [0], [1], [0, 0, 1, 1], [], []>} : vector<16x32xbf16>, vector<32x8xbf16>, vector<16x8xf32> -> vector<16x8xf32>
    %cst_15 = arith.constant dense<0.000000e+00> : vector<16x8xf32>
    %14 = tpu.matmul %4, %8, %cst_15 {dimension_numbers = #tpu.dot_dimension_numbers<[1], [0], [0], [1], [0, 0, 1, 1], [], []>} : vector<16x32xbf16>, vector<32x8xbf16>, vector<16x8xf32> -> vector<16x8xf32>
    %cst_16 = arith.constant dense<0.000000e+00> : vector<16x8xf32>
    %15 = tpu.matmul %4, %10, %cst_16 {dimension_numbers = #tpu.dot_dimension_numbers<[1], [0], [0], [1], [0, 0, 1, 1], [], []>} : vector<16x32xbf16>, vector<32x8xbf16>, vector<16x8xf32> -> vector<16x8xf32>
    %cst_17 = arith.constant 0.353553385 : f32
    %16 = vector.broadcast %cst_17 : f32 to vector<16x8xf32>
    %17 = arith.mulf %13, %16 : vector<16x8xf32>
    %18 = arith.truncf %17 : vector<16x8xf32> to vector<16x8xbf16>
    %19 = vector.shape_cast %18 : vector<16x8xbf16> to vector<2x8x8xbf16>
    %20 = arith.truncf %14 : vector<16x8xf32> to vector<16x8xbf16>
    %21 = vector.shape_cast %20 : vector<16x8xbf16> to vector<2x8x8xbf16>
    %22 = arith.truncf %15 : vector<16x8xf32> to vector<16x8xbf16>
    %23 = vector.shape_cast %22 : vector<16x8xbf16> to vector<2x8x8xbf16>
    %cst_18 = arith.constant dense<0.000000e+00> : vector<2x8x8xf32>
    %24 = tpu.matmul %19, %21, %cst_18 {dimension_numbers = #tpu.dot_dimension_numbers<[2], [2], [1], [1], [0, 0, 0, 1, 1, 1], [0], [0]>} : vector<2x8x8xbf16>, vector<2x8x8xbf16>, vector<2x8x8xf32> -> vector<2x8x8xf32>
    %cst_19 = arith.constant dense<0xFF800000> : vector<2x8xf32>
    %25 = vector.multi_reduction <maximumf>, %24, %cst_19 [2] : vector<2x8x8xf32> to vector<2x8xf32>
    %26 = vector.shape_cast %25 : vector<2x8xf32> to vector<2x8x1xf32>
    %27 = vector.broadcast %26 : vector<2x8x1xf32> to vector<2x8x8xf32>
    %28 = arith.subf %24, %27 : vector<2x8x8xf32>
    %29 = math.exp %28 : vector<2x8x8xf32>
    %cst_20 = arith.constant dense<0.000000e+00> : vector<2x8xf32>
    %30 = vector.multi_reduction <add>, %29, %cst_20 [2] : vector<2x8x8xf32> to vector<2x8xf32>
    %31 = vector.shape_cast %30 : vector<2x8xf32> to vector<2x8x1xf32>
    %32 = tpu.reciprocal %31 {approx = true} : vector<2x8x1xf32> -> vector<2x8x1xf32>
    %33 = vector.broadcast %32 : vector<2x8x1xf32> to vector<2x8x8xf32>
    %34 = arith.mulf %29, %33 : vector<2x8x8xf32>
    %35 = vector.shape_cast %34 : vector<2x8x8xf32> to vector<2x1x8x8xf32>
    %c0_21 = arith.constant 0 : index
    %c0_22 = arith.constant 0 : index
    %c0_23 = arith.constant 0 : index
    %c0_24 = arith.constant 0 : index
    %36 = vector.load %arg11[%c0_21, %c0_22, %c0_23, %c0_24] : memref<2x1x8x8xf32, #tpu.memory_space<vmem>>, vector<2x1x8x8xf32>
    tpu.vector_store %arg11[%c0_21, %c0_22, %c0_23, %c0_24], %35 {strides = array<i32>} : memref<2x1x8x8xf32, #tpu.memory_space<vmem>>, vector<2x1x8x8xf32>,
    %37 = arith.truncf %34 : vector<2x8x8xf32> to vector<2x8x8xbf16>
    %cst_25 = arith.constant dense<0.000000e+00> : vector<2x8x8xf32>
    %38 = tpu.matmul %37, %23, %cst_25 {dimension_numbers = #tpu.dot_dimension_numbers<[2], [1], [1], [2], [0, 0, 0, 1, 1, 2], [0], [0]>} : vector<2x8x8xbf16>, vector<2x8x8xbf16>, vector<2x8x8xf32> -> vector<2x8x8xf32>
    %c0_26 = arith.constant 0 : index
    %c0_27 = arith.constant 0 : index
    %c0_28 = arith.constant 0 : index
    %39 = vector.load %arg10[%c0_26, %c0_27, %c0_28] : memref<2x8x32xf32, #tpu.memory_space<vmem>>, vector<2x8x32xf32>
    %40 = vector.shape_cast %38 : vector<2x8x8xf32> to vector<16x8xf32>
    %41 = arith.truncf %40 : vector<16x8xf32> to vector<16x8xbf16>
    %cst_29 = arith.constant dense<0.000000e+00> : vector<16x32xf32>
    %42 = tpu.matmul %41, %12, %cst_29 {dimension_numbers = #tpu.dot_dimension_numbers<[1], [0], [0], [1], [0, 0, 1, 1], [], []>} : vector<16x8xbf16>, vector<8x32xbf16>, vector<16x32xf32> -> vector<16x32xf32>
    %43 = vector.shape_cast %42 : vector<16x32xf32> to vector<2x8x32xf32>
    %44 = arith.addf %39, %43 : vector<2x8x32xf32>
    %c0_30 = arith.constant 0 : index
    %c0_31 = arith.constant 0 : index
    %c0_32 = arith.constant 0 : index
    %45 = vector.load %arg10[%c0_30, %c0_31, %c0_32] : memref<2x8x32xf32, #tpu.memory_space<vmem>>, vector<2x8x32xf32>
    tpu.vector_store %arg10[%c0_30, %c0_31, %c0_32], %44 {strides = array<i32>} : memref<2x8x32xf32, #tpu.memory_space<vmem>>, vector<2x8x32xf32>,
    return
  }
  func.func @transform_0(%arg0: i32, %arg1: i32) -> (i32, i32, i32) {
    %c0_i32 = arith.constant 0 : i32
    %c0_i32_0 = arith.constant 0 : i32
    %c0_i32_1 = arith.constant 0 : i32
    return %arg0, %c0_i32, %c0_i32_0 : i32, i32, i32
  }
  func.func @transform_1(%arg0: i32, %arg1: i32) -> (i32, i32) {
    %c0_i32 = arith.constant 0 : i32
    %c0_i32_0 = arith.constant 0 : i32
    %c0_i32_1 = arith.constant 0 : i32
    return %c0_i32, %c0_i32_0 : i32, i32
  }
  func.func @transform_2(%arg0: i32, %arg1: i32) -> (i32, i32) {
    %c0_i32 = arith.constant 0 : i32
    %c0_i32_0 = arith.constant 0 : i32
    %c0_i32_1 = arith.constant 0 : i32
    return %c0_i32, %c0_i32_0 : i32, i32
  }
  func.func @transform_3(%arg0: i32, %arg1: i32) -> (i32, i32, i32) {
    %c0_i32 = arith.constant 0 : i32
    %c0_i32_0 = arith.constant 0 : i32
    %c0_i32_1 = arith.constant 0 : i32
    return %arg1, %c0_i32, %c0_i32_0 : i32, i32, i32
  }
  func.func @transform_4(%arg0: i32, %arg1: i32) -> (i32, i32, i32) {
    %c0_i32 = arith.constant 0 : i32
    %c0_i32_0 = arith.constant 0 : i32
    %c0_i32_1 = arith.constant 0 : i32
    return %arg1, %c0_i32, %c0_i32_0 : i32, i32, i32
  }
  func.func @transform_5(%arg0: i32, %arg1: i32) -> (i32, i32, i32) {
    %c0_i32 = arith.constant 0 : i32
    %c0_i32_0 = arith.constant 0 : i32
    %c0_i32_1 = arith.constant 0 : i32
    return %arg1, %c0_i32, %c0_i32_0 : i32, i32, i32
  }
  func.func @transform_6(%arg0: i32, %arg1: i32) -> (i32, i32, i32) {
    %c0_i32 = arith.constant 0 : i32
    %c0_i32_0 = arith.constant 0 : i32
    %c0_i32_1 = arith.constant 0 : i32
    return %arg1, %c0_i32, %c0_i32_0 : i32, i32, i32
  }
  func.func @transform_7(%arg0: i32, %arg1: i32) -> (i32, i32) {
    %c0_i32 = arith.constant 0 : i32
    %c0_i32_0 = arith.constant 0 : i32
    %c0_i32_1 = arith.constant 0 : i32
    return %c0_i32, %c0_i32_0 : i32, i32
  }
  func.func @transform_8(%arg0: i32, %arg1: i32) -> (i32, i32, i32) {
    %c0_i32 = arith.constant 0 : i32
    %c0_i32_0 = arith.constant 0 : i32
    %c0_i32_1 = arith.constant 0 : i32
    return %arg0, %c0_i32, %c0_i32_0 : i32, i32, i32
  }
  func.func @transform_9(%arg0: i32, %arg1: i32) -> (i32, i32, i32, i32) {
    %c0_i32 = arith.constant 0 : i32
    %c0_i32_0 = arith.constant 0 : i32
    %c0_i32_1 = arith.constant 0 : i32
    return %arg0, %arg1, %c0_i32, %c0_i32_0 : i32, i32, i32, i32
  }
}

</mosaic_0001>

<llo_original>
// kernel: tpu_custom_call.1
$region0: #{tpu_custom_call.1}
  #allocation0 [shape = 'u32[]', space=smem, size = 0x4, offset = 0x4, fixed_abs, tag = 'smem constant byte address 0x4 - core index']
  #allocation1 [shape = 'u32[144,128]{1,0:T(1,128)}', space=vmem, size = 0x12000, scoped, tag = 'internal scratch']
  #allocation2 [shape = 'bf16[2,8,32]{2,1,0:T(8,128)(2,1)}', space=vmem, size = 0x1000, scoped, tag = 'scratch operand']
  %s0 = inlined_call_operand.vmem [shape: f32[2,8,32], index: 0, kind: input, shape index: {}]
  %s1 = inlined_call_operand.vmem [shape: f32[1,32], index: 1, kind: input, shape index: {}]
  %s2 = inlined_call_operand.vmem [shape: f32[1,32], index: 2, kind: input, shape index: {}]
  %s3 = inlined_call_operand.vmem [shape: bf16[4,32,8], index: 3, kind: input, shape index: {}]
  %s4 = inlined_call_operand.vmem [shape: bf16[4,32,8], index: 4, kind: input, shape index: {}]
  %s5 = inlined_call_operand.vmem [shape: bf16[4,32,8], index: 5, kind: input, shape index: {}]
  %s6 = inlined_call_operand.vmem [shape: bf16[4,8,32], index: 6, kind: input, shape index: {}]
  %s7 = inlined_call_operand.vmem [shape: f32[1,32], index: 7, kind: input, shape index: {}]
  %s8 = inlined_call_operand.hbm [shape: f32[2,8,32], index: 8, kind: output, shape index: {0}]
  %s9 = inlined_call_operand.hbm [shape: f32[2,4,8,8], index: 9, kind: output, shape index: {1}]
  %10 = xla_tuple %s8, %s9
  %s11 = sld [smem:[#allocation0]]
  $region77: #{tpu_custom_call.1} parent=0
    _
  %s13 = ssub.s32 1, %s11
  %s14 = scalar_select 0, %s13, %s11
  $region1: #{tpu_custom_call.1} parent=0
    #allocation3 [shape = 'u8[8192]{0}', space=vmem, size = 0x2000, scoped, tag = 'output window, operand 0, single buffered']
    #allocation4 [shape = 's32[2]{0}', space=sflag, size = 0x8, scoped, tag = 'scoped memory for tpu_custom_call.1']
    #allocation5 [shape = 'u8[16384]{0}', space=vmem, size = 0x4000, scoped, tag = 'output window, operand 1']
    #allocation6 [shape = 's32[2]{0}', space=sflag, size = 0x8, scoped, tag = 'scoped memory for tpu_custom_call.1']
    %15 = vsyncpa [#allocation4], 0
    %16 = vsyncpa [#allocation6], 0
    %s17 = scalar_lea.sflag [#allocation6], 1
    %18 = vsyncpa %s17, 0
    loop: start=0, step=1, limit=6
    $region2: #{tpu_custom_call.1} parent=1 // loop_pre_header
      _
    $region3: #{tpu_custom_call.1} parent=1 // loop_header
      %s20 = sphi 0, %s24
      %p21 = scmp.ge.s32.totalorder %s20, 6
      %s27 = sphi 0, %s39
      %s28 = sphi 0, %s35
      %s29 = sphi 0, %s27
      %s30 = sphi 0, %s28
      %s31 = sphi 0, %s29
      %s32 = sphi 0, %s30
      %s42 = sphi 0, %s44
      %s45 = sphi 0, %s42
      %s46 = sphi 0, %s45
      %s62 = sphi 0, %s46
      %s66 = sphi 0, %s66
      %s68 = sphi 0, %s66
      %s69 = sphi 0, %s68
      %s83 = sphi 0, %s69
      %s87 = sphi 0, %s87
      %s89 = sphi 0, %s87
      %s90 = sphi 0, %s89
      %s104 = sphi 0, %s90
      %s110 = sphi 0, %s112
      %s113 = sphi 0, %s110
      %s114 = sphi 0, %s113
      %s130 = sphi 0, %s114
      %s136 = sphi 0, %s138
      %s139 = sphi 0, %s136
      %s140 = sphi 0, %s139
      %s156 = sphi 0, %s140
      %s162 = sphi 0, %s164
      %s165 = sphi 0, %s162
      %s166 = sphi 0, %s165
      %s182 = sphi 0, %s166
      %s188 = sphi 0, %s190
      %s191 = sphi 0, %s188
      %s192 = sphi 0, %s191
      %s208 = sphi 0, %s192
      %s212 = sphi 0, %s212
      %s214 = sphi 0, %s212
      %s215 = sphi 0, %s214
      %s229 = sphi 0, %s215
      %s235 = sphi 0, %s237
      %s238 = sphi 0, %s235
      %s239 = sphi 0, %s238
      %s255 = sphi 0, %s239
      %s263 = sphi 0, %s265
      %s266 = sphi 0, %s263
      %s267 = sphi 0, %s266
      %s283 = sphi 0, %s267
    $region4: #{tpu_custom_call.1} parent=1 // loop_header_branch
      %23 = sbr.rel (%p21) target = $region8
    $region5: #{tpu_custom_call.1} parent=1 // loop_body
      %s25 = ssub.s32 %s20, 1
      %s26 = ssub.s32 %s20, 2
      %s33 = sadd.s32 1, %s28
      %p34 = scmp.ge.s32.totalorder %s33, 4
      %s35 = scalar_select %p34, 0, %s33
      %s36 = sadd.s32 1, %s27
      %s37 = scalar_select %p34, %s36, %s27
      %p38 = scmp.ge.s32.totalorder %s37, 1
      %s39 = scalar_select %p38, 0, %s37
      %s40 = ssub.s32 %s27, %s39
      %p41 = scmp.eq.s32.totalorder %s40, 0
      %s43 = sadd.s32 %s42, 1
      %s44 = scalar_select %p41, %s42, %s43
      %p47 = pneg %p41
      %p48 = scmp.eq.s32.totalorder %s20, 3
      %p49 = por %p47, %p48
      %p50 = scmp.ne.s32.totalorder %s42, %s45
      %p51 = scmp.eq.s32.totalorder %s20, 0
      %p52 = por %p50, %p51
      %p53 = scmp.ne.s32.totalorder %s42, %s45
      %p54 = scmp.eq.s32.totalorder %s25, 3
      %p55 = por %p53, %p54
      %p56 = scmp.ne.s32.totalorder %s45, %s46
      %p57 = scmp.eq.s32.totalorder %s25, 0
      %p58 = por %p56, %p57
      %p59 = scmp.ne.s32.totalorder %s45, %s46
      %p60 = scmp.eq.s32.totalorder %s26, 3
      %p61 = por %p59, %p60
      %p63 = scmp.ne.s32.totalorder %s46, %s62
      %p64 = scmp.eq.s32.totalorder %s26, 0
      %p65 = por %p63, %p64
      %s67 = sadd.s32 %s66, 1
      %p70 = scmp.eq.s32.totalorder %s20, 3
      %p71 = scmp.ne.s32.totalorder %s66, %s68
      %p72 = scmp.eq.s32.totalorder %s20, 0
      %p73 = por %p71, %p72
      %p74 = scmp.ne.s32.totalorder %s66, %s68
      %p75 = scmp.eq.s32.totalorder %s25, 3
      %p76 = por %p74, %p75
      %p77 = scmp.ne.s32.totalorder %s68, %s69
      %p78 = scmp.eq.s32.totalorder %s25, 0
      %p79 = por %p77, %p78
      %p80 = scmp.ne.s32.totalorder %s68, %s69
      %p81 = scmp.eq.s32.totalorder %s26, 3
      %p82 = por %p80, %p81
      %p84 = scmp.ne.s32.totalorder %s69, %s83
      %p85 = scmp.eq.s32.totalorder %s26, 0
      %p86 = por %p84, %p85
      %s88 = sadd.s32 %s87, 1
      %p91 = scmp.eq.s32.totalorder %s20, 3
      %p92 = scmp.ne.s32.totalorder %s87, %s89
      %p93 = scmp.eq.s32.totalorder %s20, 0
      %p94 = por %p92, %p93
      %p95 = scmp.ne.s32.totalorder %s87, %s89
      %p96 = scmp.eq.s32.totalorder %s25, 3
      %p97 = por %p95, %p96
      %p98 = scmp.ne.s32.totalorder %s89, %s90
      %p99 = scmp.eq.s32.totalorder %s25, 0
      %p100 = por %p98, %p99
      %p101 = scmp.ne.s32.totalorder %s89, %s90
      %p102 = scmp.eq.s32.totalorder %s26, 3
      %p103 = por %p101, %p102
      %p105 = scmp.ne.s32.totalorder %s90, %s104
      %p106 = scmp.eq.s32.totalorder %s26, 0
      %p107 = por %p105, %p106
      %s108 = ssub.s32 %s28, %s35
      %p109 = scmp.eq.s32.totalorder %s108, 0
      %s111 = sadd.s32 %s110, 1
      %s112 = scalar_select %p109, %s110, %s111
      %p115 = pneg %p109
      %p116 = scmp.eq.s32.totalorder %s20, 3
      %p117 = por %p115, %p116
      %p118 = scmp.ne.s32.totalorder %s110, %s113
      %p119 = scmp.eq.s32.totalorder %s20, 0
      %p120 = por %p118, %p119
      %p121 = scmp.ne.s32.totalorder %s110, %s113
      %p122 = scmp.eq.s32.totalorder %s25, 3
      %p123 = por %p121, %p122
      %p124 = scmp.ne.s32.totalorder %s113, %s114
      %p125 = scmp.eq.s32.totalorder %s25, 0
      %p126 = por %p124, %p125
      %p127 = scmp.ne.s32.totalorder %s113, %s114
      %p128 = scmp.eq.s32.totalorder %s26, 3
      %p129 = por %p127, %p128
      %p131 = scmp.ne.s32.totalorder %s114, %s130
      %p132 = scmp.eq.s32.totalorder %s26, 0
      %p133 = por %p131, %p132
      %s134 = ssub.s32 %s28, %s35
      %p135 = scmp.eq.s32.totalorder %s134, 0
      %s137 = sadd.s32 %s136, 1
      %s138 = scalar_select %p135, %s136, %s137
      %p141 = pneg %p135
      %p142 = scmp.eq.s32.totalorder %s20, 3
      %p143 = por %p141, %p142
      %p144 = scmp.ne.s32.totalorder %s136, %s139
      %p145 = scmp.eq.s32.totalorder %s20, 0
      %p146 = por %p144, %p145
      %p147 = scmp.ne.s32.totalorder %s136, %s139
      %p148 = scmp.eq.s32.totalorder %s25, 3
      %p149 = por %p147, %p148
      %p150 = scmp.ne.s32.totalorder %s139, %s140
      %p151 = scmp.eq.s32.totalorder %s25, 0
      %p152 = por %p150, %p151
      %p153 = scmp.ne.s32.totalorder %s139, %s140
      %p154 = scmp.eq.s32.totalorder %s26, 3
      %p155 = por %p153, %p154
      %p157 = scmp.ne.s32.totalorder %s140, %s156
      %p158 = scmp.eq.s32.totalorder %s26, 0
      %p159 = por %p157, %p158
      %s160 = ssub.s32 %s28, %s35
      %p161 = scmp.eq.s32.totalorder %s160, 0
      %s163 = sadd.s32 %s162, 1
      %s164 = scalar_select %p161, %s162, %s163
      %p167 = pneg %p161
      %p168 = scmp.eq.s32.totalorder %s20, 3
      %p169 = por %p167, %p168
      %p170 = scmp.ne.s32.totalorder %s162, %s165
      %p171 = scmp.eq.s32.totalorder %s20, 0
      %p172 = por %p170, %p171
      %p173 = scmp.ne.s32.totalorder %s162, %s165
      %p174 = scmp.eq.s32.totalorder %s25, 3
      %p175 = por %p173, %p174
      %p176 = scmp.ne.s32.totalorder %s165, %s166
      %p177 = scmp.eq.s32.totalorder %s25, 0
      %p178 = por %p176, %p177
      %p179 = scmp.ne.s32.totalorder %s165, %s166
      %p180 = scmp.eq.s32.totalorder %s26, 3
      %p181 = por %p179, %p180
      %p183 = scmp.ne.s32.totalorder %s166, %s182
      %p184 = scmp.eq.s32.totalorder %s26, 0
      %p185 = por %p183, %p184
      %s186 = ssub.s32 %s28, %s35
      %p187 = scmp.eq.s32.totalorder %s186, 0
      %s189 = sadd.s32 %s188, 1
      %s190 = scalar_select %p187, %s188, %s189
      %p193 = pneg %p187
      %p194 = scmp.eq.s32.totalorder %s20, 3
      %p195 = por %p193, %p194
      %p196 = scmp.ne.s32.totalorder %s188, %s191
      %p197 = scmp.eq.s32.totalorder %s20, 0
      %p198 = por %p196, %p197
      %p199 = scmp.ne.s32.totalorder %s188, %s191
      %p200 = scmp.eq.s32.totalorder %s25, 3
      %p201 = por %p199, %p200
      %p202 = scmp.ne.s32.totalorder %s191, %s192
      %p203 = scmp.eq.s32.totalorder %s25, 0
      %p204 = por %p202, %p203
      %p205 = scmp.ne.s32.totalorder %s191, %s192
      %p206 = scmp.eq.s32.totalorder %s26, 3
      %p207 = por %p205, %p206
      %p209 = scmp.ne.s32.totalorder %s192, %s208
      %p210 = scmp.eq.s32.totalorder %s26, 0
      %p211 = por %p209, %p210
      %s213 = sadd.s32 %s212, 1
      %p216 = scmp.eq.s32.totalorder %s20, 3
      %p217 = scmp.ne.s32.totalorder %s212, %s214
      %p218 = scmp.eq.s32.totalorder %s20, 0
      %p219 = por %p217, %p218
      %p220 = scmp.ne.s32.totalorder %s212, %s214
      %p221 = scmp.eq.s32.totalorder %s25, 3
      %p222 = por %p220, %p221
      %p223 = scmp.ne.s32.totalorder %s214, %s215
      %p224 = scmp.eq.s32.totalorder %s25, 0
      %p225 = por %p223, %p224
      %p226 = scmp.ne.s32.totalorder %s214, %s215
      %p227 = scmp.eq.s32.totalorder %s26, 3
      %p228 = por %p226, %p227
      %p230 = scmp.ne.s32.totalorder %s215, %s229
      %p231 = scmp.eq.s32.totalorder %s26, 0
      %p232 = por %p230, %p231
      %s233 = ssub.s32 %s27, %s39
      %p234 = scmp.eq.s32.totalorder %s233, 0
      %s236 = sadd.s32 %s235, 1
      %s237 = scalar_select %p234, %s235, %s236
      %p240 = pneg %p234
      %p241 = scmp.eq.s32.totalorder %s20, 3
      %p242 = por %p240, %p241
      %p243 = scmp.ne.s32.totalorder %s235, %s238
      %p244 = scmp.eq.s32.totalorder %s20, 0
      %p245 = por %p243, %p244
      %p246 = scmp.ne.s32.totalorder %s235, %s238
      %p247 = scmp.eq.s32.totalorder %s25, 3
      %p248 = por %p246, %p247
      %p249 = scmp.ne.s32.totalorder %s238, %s239
      %p250 = scmp.eq.s32.totalorder %s25, 0
      %p251 = por %p249, %p250
      %p252 = scmp.ne.s32.totalorder %s238, %s239
      %p253 = scmp.eq.s32.totalorder %s26, 3
      %p254 = por %p252, %p253
      %p256 = scmp.ne.s32.totalorder %s239, %s255
      %p257 = scmp.eq.s32.totalorder %s26, 0
      %p258 = por %p256, %p257
      %s259 = ssub.s32 %s27, %s39
      %s260 = ssub.s32 %s28, %s35
      %s261 = sor.u32 %s259, %s260
      %p262 = scmp.eq.s32.totalorder %s261, 0
      %s264 = sadd.s32 %s263, 1
      %s265 = scalar_select %p262, %s263, %s264
      %p268 = pneg %p262
      %p269 = scmp.eq.s32.totalorder %s20, 3
      %p270 = por %p268, %p269
      %p271 = scmp.ne.s32.totalorder %s263, %s266
      %p272 = scmp.eq.s32.totalorder %s20, 0
      %p273 = por %p271, %p272
      %p274 = scmp.ne.s32.totalorder %s263, %s266
      %p275 = scmp.eq.s32.totalorder %s25, 3
      %p276 = por %p274, %p275
      %p277 = scmp.ne.s32.totalorder %s266, %s267
      %p278 = scmp.eq.s32.totalorder %s25, 0
      %p279 = por %p277, %p278
      %p280 = scmp.ne.s32.totalorder %s266, %s267
      %p281 = scmp.eq.s32.totalorder %s26, 3
      %p282 = por %p280, %p281
      %p284 = scmp.ne.s32.totalorder %s267, %s283
      %p285 = scmp.eq.s32.totalorder %s26, 0
      %p286 = por %p284, %p285
      %p287 = scmp.le.s32.totalorder 1, %s20
      %p288 = scmp.lt.s32.totalorder %s20, 5
      %p289 = pnand %p287, %p288
      %p290 = pneg %p289
      // Predicated region
      $region9: #{tpu_custom_call.1} parent=5 // pred_check
        _
      $region10: #{tpu_custom_call.1} parent=5 // pred_check_branch
        %292 = sbr.rel (%p289) target = $region12
      $region11: #{tpu_custom_call.1} parent=5 // pred_region
        %s293 = ssub.s32 %s20, 1
        // Predicated region
        $region13: #{tpu_custom_call.1} parent=11 // pred_check
          %p294 = pneg %p58
        $region14: #{tpu_custom_call.1} parent=11 // pred_check_branch
          %296 = sbr.rel (%p294) target = $region16
        $region15: #{tpu_custom_call.1} parent=11 // pred_region
          %s297 = smul.u32 2, %s29
          %p298 = scmp.lt.s32.totalorder %s297, 1
          %s299 = scalar_select %p298, %s297, 1
          %s300 = smul.addr %s299, 8
          %s301 = scalar_lea.vmem %s0, %s300
          %s302 = smul.u32 2, %s29
        $region16: #{tpu_custom_call.1} parent=11 // pred_fallthru
          _
        // Predicated region
        $region17: #{tpu_custom_call.1} parent=11 // pred_check
          %p303 = pneg %p79
        $region18: #{tpu_custom_call.1} parent=11 // pred_check_branch
          %305 = sbr.rel (%p303) target = $region20
        $region19: #{tpu_custom_call.1} parent=11 // pred_region
          _
        $region20: #{tpu_custom_call.1} parent=11 // pred_fallthru
          _
        // Predicated region
        $region21: #{tpu_custom_call.1} parent=11 // pred_check
          %p306 = pneg %p100
        $region22: #{tpu_custom_call.1} parent=11 // pred_check_branch
          %308 = sbr.rel (%p306) target = $region24
        $region23: #{tpu_custom_call.1} parent=11 // pred_region
          _
        $region24: #{tpu_custom_call.1} parent=11 // pred_fallthru
          _
        // Predicated region
        $region25: #{tpu_custom_call.1} parent=11 // pred_check
          %p309 = pneg %p225
        $region26: #{tpu_custom_call.1} parent=11 // pred_check_branch
          %311 = sbr.rel (%p309) target = $region28
        $region27: #{tpu_custom_call.1} parent=11 // pred_region
          _
        $region28: #{tpu_custom_call.1} parent=11 // pred_fallthru
          _
      $region12: #{tpu_custom_call.1} parent=5 // pred_fallthru
        _
      %p312 = scmp.lt.s32.totalorder %s20, 4
      // Predicated region
      $region29: #{tpu_custom_call.1} parent=5 // pred_check
        %p313 = pneg %p312
      $region30: #{tpu_custom_call.1} parent=5 // pred_check_branch
        %315 = sbr.rel (%p313) target = $region32
      $region31: #{tpu_custom_call.1} parent=5 // pred_region
        // Predicated region
        $region33: #{tpu_custom_call.1} parent=31 // pred_check
          %p316 = pneg %p120
        $region34: #{tpu_custom_call.1} parent=31 // pred_check_branch
          %318 = sbr.rel (%p316) target = $region36
        $region35: #{tpu_custom_call.1} parent=31 // pred_region
          %p319 = scmp.lt.s32.totalorder %s28, 3
          %s320 = scalar_select %p319, %s28, 3
          %s321 = smul.addr %s320, 4
          %s322 = smul.addr %s321, 4
          %s323 = scalar_lea.vmem %s3, %s322
        $region36: #{tpu_custom_call.1} parent=31 // pred_fallthru
          _
        // Predicated region
        $region37: #{tpu_custom_call.1} parent=31 // pred_check
          %p324 = pneg %p146
        $region38: #{tpu_custom_call.1} parent=31 // pred_check_branch
          %326 = sbr.rel (%p324) target = $region40
        $region39: #{tpu_custom_call.1} parent=31 // pred_region
          %p327 = scmp.lt.s32.totalorder %s28, 3
          %s328 = scalar_select %p327, %s28, 3
          %s329 = smul.addr %s328, 4
          %s330 = smul.addr %s329, 4
          %s331 = scalar_lea.vmem %s4, %s330
        $region40: #{tpu_custom_call.1} parent=31 // pred_fallthru
          _
        // Predicated region
        $region41: #{tpu_custom_call.1} parent=31 // pred_check
          %p332 = pneg %p172
        $region42: #{tpu_custom_call.1} parent=31 // pred_check_branch
          %334 = sbr.rel (%p332) target = $region44
        $region43: #{tpu_custom_call.1} parent=31 // pred_region
          %p335 = scmp.lt.s32.totalorder %s28, 3
          %s336 = scalar_select %p335, %s28, 3
          %s337 = smul.addr %s336, 4
          %s338 = smul.addr %s337, 4
          %s339 = scalar_lea.vmem %s5, %s338
        $region44: #{tpu_custom_call.1} parent=31 // pred_fallthru
          _
        // Predicated region
        $region45: #{tpu_custom_call.1} parent=31 // pred_check
          %p340 = pneg %p198
        $region46: #{tpu_custom_call.1} parent=31 // pred_check_branch
          %342 = sbr.rel (%p340) target = $region48
        $region47: #{tpu_custom_call.1} parent=31 // pred_region
          %p343 = scmp.lt.s32.totalorder %s28, 3
          %s344 = scalar_select %p343, %s28, 3
          %s345 = smul.addr %s344, 4
          %s346 = scalar_lea.vmem %s6, %s345
        $region48: #{tpu_custom_call.1} parent=31 // pred_fallthru
          _
      $region32: #{tpu_custom_call.1} parent=5 // pred_fallthru
        _
      %p347 = scmp.le.s32.totalorder 1, %s20
      %p348 = scmp.lt.s32.totalorder %s20, 5
      %p349 = pnand %p347, %p348
      %p350 = pneg %p349
      // Predicated region
      $region49: #{tpu_custom_call.1} parent=5 // pred_check
        _
      $region50: #{tpu_custom_call.1} parent=5 // pred_check_branch
        %352 = sbr.rel (%p349) target = $region52
      $region51: #{tpu_custom_call.1} parent=5 // pred_region
        %s353 = ssub.s32 %s20, 1
        %s354 = smul.u32 2, %s29
        %p355 = scmp.lt.s32.totalorder %s354, 1
        %s356 = scalar_select %p355, %s354, 1
        %s357 = smul.addr %s356, 8
        %s358 = scalar_lea.vmem %s0, %s357
        %p359 = pneg %p58
        %p360 = pneg %p55
        %p361 = pneg %p79
        %p362 = pneg %p76
        %p363 = pneg %p100
        %p364 = pneg %p97
        %p365 = scmp.lt.s32.totalorder %s30, 3
        %s366 = scalar_select %p365, %s30, 3
        %s367 = smul.addr %s366, 4
        %s368 = smul.addr %s367, 4
        %s369 = scalar_lea.vmem %s3, %s368
        %p370 = pneg %p126
        %p371 = pneg %p123
        %p372 = scmp.lt.s32.totalorder %s30, 3
        %s373 = scalar_select %p372, %s30, 3
        %s374 = smul.addr %s373, 4
        %s375 = smul.addr %s374, 4
        %s376 = scalar_lea.vmem %s4, %s375
        %p377 = pneg %p152
        %p378 = pneg %p149
        %p379 = scmp.lt.s32.totalorder %s30, 3
        %s380 = scalar_select %p379, %s30, 3
        %s381 = smul.addr %s380, 4
        %s382 = smul.addr %s381, 4
        %s383 = scalar_lea.vmem %s5, %s382
        %p384 = pneg %p178
        %p385 = pneg %p175
        %p386 = scmp.lt.s32.totalorder %s30, 3
        %s387 = scalar_select %p386, %s30, 3
        %s388 = smul.addr %s387, 4
        %s389 = scalar_lea.vmem %s6, %s388
        %p390 = pneg %p204
        %p391 = pneg %p201
        %p392 = pneg %p225
        %p393 = pneg %p222
        %p394 = pneg %p251
        %p395 = pneg %p248
        %p396 = pneg %p279
        %p397 = pneg %p276
        %s398 = sand.u32 %s266, 1
        %s399 = scalar_lea.sflag [#allocation6], %s398
        %s400 = sand.u32 %s266, 1
        %s401 = smul.addr %s400, 16
        %s402 = scalar_lea.vmem [#allocation5], %s401
        %s403 = smul.u32 2, %s29
        %p404 = scmp.lt.s32.totalorder %s403, 1
        %s405 = scalar_select %p404, %s403, 1
        %s406 = smul.addr %s405, 8
        %s407 = scalar_lea.vmem %s0, %s406
        %s408 = smul.u32 2, %s29
        %p409 = scmp.lt.s32.totalorder %s30, 3
        %s410 = scalar_select %p409, %s30, 3
        %s411 = smul.addr %s410, 4
        %s412 = smul.addr %s411, 4
        %s413 = scalar_lea.vmem %s3, %s412
        %p414 = scmp.lt.s32.totalorder %s30, 3
        %s415 = scalar_select %p414, %s30, 3
        %s416 = smul.addr %s415, 4
        %s417 = smul.addr %s416, 4
        %s418 = scalar_lea.vmem %s4, %s417
        %p419 = scmp.lt.s32.totalorder %s30, 3
        %s420 = scalar_select %p419, %s30, 3
        %s421 = smul.addr %s420, 4
        %s422 = smul.addr %s421, 4
        %s423 = scalar_lea.vmem %s5, %s422
        %p424 = scmp.lt.s32.totalorder %s30, 3
        %s425 = scalar_select %p424, %s30, 3
        %s426 = smul.addr %s425, 4
        %s427 = scalar_lea.vmem %s6, %s426
        %s428 = smul.u32 2, %s29
        %s429 = smul.u32 2, %s29
        %p431 = scmp.eq.s32.totalorder %s30, 0
        // Predicated region
        $region53: #{tpu_custom_call.1} parent=51 // pred_check
          %p432 = pneg %p431
        $region54: #{tpu_custom_call.1} parent=51 // pred_check_branch
          %434 = sbr.rel (%p432) target = $region56
        $region55: #{tpu_custom_call.1} parent=51 // pred_region
          %v435 = vld [vmem:[%s407] sm:$0xff]
          %v436 = vld [vmem:[%s407 + $0x8] sm:$0xff]
          %vm437 = vcmask 261120
          %v438 = vsel %vm437, %v435, 0.0
          %439 = vadd.xlane.f32.xlu0 %v438
          %v440 = vpop.xlane.xlu0 %439
          %v441 = vsel %vm437, %v436, 0.0
          %442 = vadd.xlane.f32.xlu0 %v441
          %v443 = vpop.xlane.xlu0 %442
          %v444 = vrcp.pop 32.0
          %v445 = vmul.f32 %v440, %v444
          %v446 = vmul.f32 %v443, %v444
          %v447 = vsub.f32 %v435, %v445
          %v448 = vsub.f32 %v436, %v446
          %v449 = vmul.f32 %v447, %v447
          %v450 = vmul.f32 %v448, %v448
          %v451 = vsel %vm437, %v449, 0.0
          %452 = vadd.xlane.f32.xlu0 %v451
          %v453 = vpop.xlane.xlu0 %452
          %v454 = vsel %vm437, %v450, 0.0
          %455 = vadd.xlane.f32.xlu0 %v454
          %v456 = vpop.xlane.xlu0 %455
          %v457 = vmul.f32 %v453, %v444
          %v458 = vmul.f32 %v456, %v444
          %v459 = vadd.f32 %v457, 1e-05
          %v460 = vadd.f32 %v458, 1e-05
          %v461 = vrsqrt.pop %v459
          %v462 = vrsqrt.pop %v460
          %v463 = vmul.f32 %v447, %v461
          %v464 = vmul.f32 %v448, %v462
          %v465 = vld [vmem:[%s1] sm:$0x1]
          %v467 = vlaneseq
          %v468 = vshrl.u32 %v467, 7
          %v469 = vsub.s32 0, %v468
          %v470 = vrot.slane %v465, %v469
          %v472 = vmul.f32 %v463, %v470
          %v473 = vmul.f32 %v464, %v470
          %v474 = vld [vmem:[%s2] sm:$0x1]
          %v476 = vlaneseq
          %v477 = vshrl.u32 %v476, 7
          %v478 = vsub.s32 0, %v477
          %v479 = vrot.slane %v474, %v478
          %v481 = vadd.f32 %v472, %v479
          %v482 = vadd.f32 %v473, %v479
          %v483 = vpack.c.bf16 %v481, %v481
          %v484 = vpack.c.bf16 %v482, %v482
          %vm485 = vcmask 257024
          %486 = vst.msk [vmem:[#allocation2] sm:$0xf] %vm485, %v483
          %487 = vst.msk [vmem:[#allocation2 + $0x4] sm:$0xf] %vm485, %v484
          %v488 = vld [vmem:[%s7] sm:$0x1]
          %v490 = vlaneseq
          %v491 = vshrl.u32 %v490, 7
          %v492 = vsub.s32 0, %v491
          %v493 = vrot.slane %v488, %v492
          %495 = vst.msk [vmem:[#allocation3] sm:$0xff] %vm437, %v493
          %496 = vst.msk [vmem:[#allocation3 + $0x8] sm:$0xff] %vm437, %v493
        $region56: #{tpu_custom_call.1} parent=51 // pred_fallthru
          _
        %v497 = vld [vmem:[#allocation2] sm:$0xf]
        %v498 = vld [vmem:[#allocation2 + $0x4] sm:$0xf]
        %v499 = vld [vmem:[%s413] sm:$0xf]
        %v500 = vld [vmem:[%s413 + $0x4] sm:$0xf]
        %v501 = vld [vmem:[%s413 + $0x8] sm:$0xf]
        %v502 = vld [vmem:[%s413 + $0xc] sm:$0xf]
        %v503 = vld [vmem:[%s418] sm:$0xf]
        %v504 = vld [vmem:[%s418 + $0x4] sm:$0xf]
        %v505 = vld [vmem:[%s418 + $0x8] sm:$0xf]
        %v506 = vld [vmem:[%s418 + $0xc] sm:$0xf]
        %v507 = vld [vmem:[%s423] sm:$0xf]
        %v508 = vld [vmem:[%s423 + $0x4] sm:$0xf]
        %v509 = vld [vmem:[%s423 + $0x8] sm:$0xf]
        %v510 = vld [vmem:[%s423 + $0xc] sm:$0xf]
        %v511 = vld [vmem:[%s427] sm:$0xf]
        %v514 = vunpack.c.l.b16 %v497
        %v515 = vunpack.c.l.b16 %v498
        %v516 = vpack.c.b16 %v515, %v514
        %v521 = vunpack.c.l.b16 %v499
        %v522 = vunpack.c.l.b16 %v500
        %v523 = vunpack.c.l.b16 %v501
        %v524 = vunpack.c.l.b16 %v502
        %v525 = vpack.c.b16 %v522, %v521
        %v526 = vpack.c.b16 %v524, %v523
        %vm529 = vcmask 261120
        %v531 = vsel %vm529, %v516, 0
        %533 = vmatprep.subr.bf16.mxu0 0
        %534 = vmatpush1.bf16.msra.mxu0 0
        %535 = vmatprep.subr.bf16.mxu0 0
        %536 = vmatpush1.bf16.msra.mxu0 0
        %537 = vmatprep.subr.bf16.mxu0 0
        %538 = vmatpush1.bf16.msra.mxu0 0
        %539 = vmatprep.subr.bf16.mxu0 0
        %540 = vmatpush1.bf16.msra.mxu0 0
        %541 = vmatprep.subr.bf16.mxu0 0
        %542 = vmatpush1.bf16.msra.mxu0 0
        %543 = vmatprep.subr.bf16.mxu0 0
        %544 = vmatpush1.bf16.msra.mxu0 0
        %545 = vmatprep.subr.bf16.mxu0 0
        %546 = vmatpush1.bf16.msra.mxu0 %v526
        %547 = vmatprep.subr.bf16.mxu0 0
        %548 = vmatpush1.bf16.msra.mxu0 %v525
        %549 = vmatprep.subr.bf16.mxu0 0
        %550 = vmatpush2.bf16.msra.mxu0 0
        %551 = vmatprep.subr.bf16.mxu0 0
        %552 = vmatpush2.bf16.msra.mxu0 0
        %553 = vmatprep.subr.bf16.mxu0 0
        %554 = vmatpush2.bf16.msra.mxu0 0
        %555 = vmatprep.subr.bf16.mxu0 0
        %556 = vmatpush2.bf16.msra.mxu0 0
        %557 = vmatprep.subr.bf16.mxu0 0
        %558 = vmatpush2.bf16.msra.mxu0 0
        %559 = vmatprep.subr.bf16.mxu0 0
        %560 = vmatpush2.bf16.msra.mxu0 0
        %561 = vmatprep.subr.bf16.mxu0 0
        %562 = vmatpush2.bf16.msra.mxu0 0
        %563 = vmatprep.subr.bf16.mxu0 0
        %564 = vmatpush2.bf16.msra.mxu0 0
        %565 = vmatprep.mubr.bf16.mxu0 0
        %566 = vmatmul.mubr.bf16.gmra.mxu0 %v531
        %v567 = vpop.f32.mrf.mxu0
        %v568 = vadd.f32 0.0, %v567
        %v569 = vpop.f32.mrf.mxu0
        %v570 = vpop.f32.mrf.mxu0
        %v571 = vadd.f32 0.0, %v570
        %v572 = vpop.f32.mrf.mxu0
        %573 = vdwg.mxu0
        %v578 = vunpack.c.l.b16 %v503
        %v579 = vunpack.c.l.b16 %v504
        %v580 = vunpack.c.l.b16 %v505
        %v581 = vunpack.c.l.b16 %v506
        %v582 = vpack.c.b16 %v579, %v578
        %v583 = vpack.c.b16 %v581, %v580
        %586 = vmatprep.subr.bf16.mxu0 0
        %587 = vmatpush1.bf16.msra.mxu0 0
        %588 = vmatprep.subr.bf16.mxu0 0
        %589 = vmatpush1.bf16.msra.mxu0 0
        %590 = vmatprep.subr.bf16.mxu0 0
        %591 = vmatpush1.bf16.msra.mxu0 0
        %592 = vmatprep.subr.bf16.mxu0 0
        %593 = vmatpush1.bf16.msra.mxu0 0
        %594 = vmatprep.subr.bf16.mxu0 0
        %595 = vmatpush1.bf16.msra.mxu0 0
        %596 = vmatprep.subr.bf16.mxu0 0
        %597 = vmatpush1.bf16.msra.mxu0 0
        %598 = vmatprep.subr.bf16.mxu0 0
        %599 = vmatpush1.bf16.msra.mxu0 %v583
        %600 = vmatprep.subr.bf16.mxu0 0
        %601 = vmatpush1.bf16.msra.mxu0 %v582
        %602 = vmatprep.subr.bf16.mxu0 0
        %603 = vmatpush2.bf16.msra.mxu0 0
        %604 = vmatprep.subr.bf16.mxu0 0
        %605 = vmatpush2.bf16.msra.mxu0 0
        %606 = vmatprep.subr.bf16.mxu0 0
        %607 = vmatpush2.bf16.msra.mxu0 0
        %608 = vmatprep.subr.bf16.mxu0 0
        %609 = vmatpush2.bf16.msra.mxu0 0
        %610 = vmatprep.subr.bf16.mxu0 0
        %611 = vmatpush2.bf16.msra.mxu0 0
        %612 = vmatprep.subr.bf16.mxu0 0
        %613 = vmatpush2.bf16.msra.mxu0 0
        %614 = vmatprep.subr.bf16.mxu0 0
        %615 = vmatpush2.bf16.msra.mxu0 0
        %616 = vmatprep.subr.bf16.mxu0 0
        %617 = vmatpush2.bf16.msra.mxu0 0
        %618 = vmatprep.mubr.bf16.mxu0 0
        %619 = vmatmul.mubr.bf16.gmra.mxu0 %v531
        %v620 = vpop.f32.mrf.mxu0
        %v621 = vadd.f32 0.0, %v620
        %v622 = vpop.f32.mrf.mxu0
        %v623 = vpop.f32.mrf.mxu0
        %v624 = vadd.f32 0.0, %v623
        %v625 = vpop.f32.mrf.mxu0
        %626 = vdwg.mxu0
        %v631 = vunpack.c.l.b16 %v507
        %v632 = vunpack.c.l.b16 %v508
        %v633 = vunpack.c.l.b16 %v509
        %v634 = vunpack.c.l.b16 %v510
        %v635 = vpack.c.b16 %v632, %v631
        %v636 = vpack.c.b16 %v634, %v633
        %639 = vmatprep.subr.bf16.mxu0 0
        %640 = vmatpush1.bf16.msra.mxu0 0
        %641 = vmatprep.subr.bf16.mxu0 0
        %642 = vmatpush1.bf16.msra.mxu0 0
        %643 = vmatprep.subr.bf16.mxu0 0
        %644 = vmatpush1.bf16.msra.mxu0 0
        %645 = vmatprep.subr.bf16.mxu0 0
        %646 = vmatpush1.bf16.msra.mxu0 0
        %647 = vmatprep.subr.bf16.mxu0 0
        %648 = vmatpush1.bf16.msra.mxu0 0
        %649 = vmatprep.subr.bf16.mxu0 0
        %650 = vmatpush1.bf16.msra.mxu0 0
        %651 = vmatprep.subr.bf16.mxu0 0
        %652 = vmatpush1.bf16.msra.mxu0 %v636
        %653 = vmatprep.subr.bf16.mxu0 0
        %654 = vmatpush1.bf16.msra.mxu0 %v635
        %655 = vmatprep.subr.bf16.mxu0 0
        %656 = vmatpush2.bf16.msra.mxu0 0
        %657 = vmatprep.subr.bf16.mxu0 0
        %658 = vmatpush2.bf16.msra.mxu0 0
        %659 = vmatprep.subr.bf16.mxu0 0
        %660 = vmatpush2.bf16.msra.mxu0 0
        %661 = vmatprep.subr.bf16.mxu0 0
        %662 = vmatpush2.bf16.msra.mxu0 0
        %663 = vmatprep.subr.bf16.mxu0 0
        %664 = vmatpush2.bf16.msra.mxu0 0
        %665 = vmatprep.subr.bf16.mxu0 0
        %666 = vmatpush2.bf16.msra.mxu0 0
        %667 = vmatprep.subr.bf16.mxu0 0
        %668 = vmatpush2.bf16.msra.mxu0 0
        %669 = vmatprep.subr.bf16.mxu0 0
        %670 = vmatpush2.bf16.msra.mxu0 0
        %671 = vmatprep.mubr.bf16.mxu0 0
        %672 = vmatmul.mubr.bf16.gmra.mxu0 %v531
        %v673 = vpop.f32.mrf.mxu0
        %v674 = vadd.f32 0.0, %v673
        %v675 = vpop.f32.mrf.mxu0
        %v676 = vpop.f32.mrf.mxu0
        %v677 = vadd.f32 0.0, %v676
        %v678 = vpop.f32.mrf.mxu0
        %679 = vdwg.mxu0
        %v680 = vmul.f32 %v568, 0.35355338
        %v681 = vmul.f32 %v571, 0.35355338
        %v682 = vpack.c.bf16 %v681, %v680
        %v684 = vunpack.c.l.b16 %v682
        %v685 = vunpack.c.h.b16 %v682
        %v686 = vpack.c.b16 %v684, %v684
        %v687 = vpack.c.b16 %v685, %v685
        %v688 = vpack.c.bf16 %v624, %v621
        %v690 = vunpack.c.l.b16 %v688
        %v691 = vunpack.c.h.b16 %v688
        %v692 = vpack.c.b16 %v690, %v690
        %v693 = vpack.c.b16 %v691, %v691
        %v694 = vpack.c.bf16 %v677, %v674
        %v696 = vunpack.c.l.b16 %v694
        %v697 = vunpack.c.h.b16 %v694
        %v698 = vpack.c.b16 %v696, %v696
        %v699 = vpack.c.b16 %v697, %v697
        %vm700 = vcmask 64512
        %v702 = vsel %vm700, %v686, 0
        %v705 = vsel %vm700, %v692, 0
        %707 = vmatprep.subr.bf16.mxu0 0
        %708 = vmatpush1.bf16.xpose.msra.mxu0 0
        %709 = vmatprep.subr.bf16.mxu0 0
        %710 = vmatpush1.bf16.xpose.msra.mxu0 0
        %711 = vmatprep.subr.bf16.mxu0 0
        %712 = vmatpush1.bf16.xpose.msra.mxu0 0
        %713 = vmatprep.subr.bf16.mxu0 0
        %714 = vmatpush1.bf16.xpose.msra.mxu0 0
        %715 = vmatprep.subr.bf16.mxu0 0
        %716 = vmatpush1.bf16.xpose.msra.mxu0 0
        %717 = vmatprep.subr.bf16.mxu0 0
        %718 = vmatpush1.bf16.xpose.msra.mxu0 0
        %719 = vmatprep.subr.bf16.mxu0 0
        %720 = vmatpush1.bf16.xpose.msra.mxu0 0
        %721 = vmatprep.subr.bf16.mxu0 0
        %722 = vmatpush1.bf16.xpose.msra.mxu0 %v705
        %723 = vmatprep.subr.bf16.mxu0 0
        %724 = vmatpush2.bf16.xpose.msra.mxu0 0
        %725 = vmatprep.subr.bf16.mxu0 0
        %726 = vmatpush2.bf16.xpose.msra.mxu0 0
        %727 = vmatprep.subr.bf16.mxu0 0
        %728 = vmatpush2.bf16.xpose.msra.mxu0 0
        %729 = vmatprep.subr.bf16.mxu0 0
        %730 = vmatpush2.bf16.xpose.msra.mxu0 0
        %731 = vmatprep.subr.bf16.mxu0 0
        %732 = vmatpush2.bf16.xpose.msra.mxu0 0
        %733 = vmatprep.subr.bf16.mxu0 0
        %734 = vmatpush2.bf16.xpose.msra.mxu0 0
        %735 = vmatprep.subr.bf16.mxu0 0
        %736 = vmatpush2.bf16.xpose.msra.mxu0 0
        %737 = vmatprep.subr.bf16.mxu0 0
        %738 = vmatpush2.bf16.xpose.msra.mxu0 0
        %739 = vmatprep.mubr.bf16.mxu0 0
        %740 = vmatmul.mubr.bf16.gmra.mxu0 %v702
        %v741 = vpop.f32.mrf.mxu0
        %v742 = vadd.f32 0.0, %v741
        %v743 = vpop.f32.mrf.mxu0
        %v744 = vpop.f32.mrf.mxu0
        %v745 = vpop.f32.mrf.mxu0
        %746 = vdwg.mxu0
        %v748 = vsel %vm700, %v687, 0
        %v751 = vsel %vm700, %v693, 0
        %753 = vmatprep.subr.bf16.mxu0 0
        %754 = vmatpush1.bf16.xpose.msra.mxu0 0
        %755 = vmatprep.subr.bf16.mxu0 0
        %756 = vmatpush1.bf16.xpose.msra.mxu0 0
        %757 = vmatprep.subr.bf16.mxu0 0
        %758 = vmatpush1.bf16.xpose.msra.mxu0 0
        %759 = vmatprep.subr.bf16.mxu0 0
        %760 = vmatpush1.bf16.xpose.msra.mxu0 0
        %761 = vmatprep.subr.bf16.mxu0 0
        %762 = vmatpush1.bf16.xpose.msra.mxu0 0
        %763 = vmatprep.subr.bf16.mxu0 0
        %764 = vmatpush1.bf16.xpose.msra.mxu0 0
        %765 = vmatprep.subr.bf16.mxu0 0
        %766 = vmatpush1.bf16.xpose.msra.mxu0 0
        %767 = vmatprep.subr.bf16.mxu0 0
        %768 = vmatpush1.bf16.xpose.msra.mxu0 %v751
        %769 = vmatprep.subr.bf16.mxu0 0
        %770 = vmatpush2.bf16.xpose.msra.mxu0 0
        %771 = vmatprep.subr.bf16.mxu0 0
        %772 = vmatpush2.bf16.xpose.msra.mxu0 0
        %773 = vmatprep.subr.bf16.mxu0 0
        %774 = vmatpush2.bf16.xpose.msra.mxu0 0
        %775 = vmatprep.subr.bf16.mxu0 0
        %776 = vmatpush2.bf16.xpose.msra.mxu0 0
        %777 = vmatprep.subr.bf16.mxu0 0
        %778 = vmatpush2.bf16.xpose.msra.mxu0 0
        %779 = vmatprep.subr.bf16.mxu0 0
        %780 = vmatpush2.bf16.xpose.msra.mxu0 0
        %781 = vmatprep.subr.bf16.mxu0 0
        %782 = vmatpush2.bf16.xpose.msra.mxu0 0
        %783 = vmatprep.subr.bf16.mxu0 0
        %784 = vmatpush2.bf16.xpose.msra.mxu0 0
        %785 = vmatprep.mubr.bf16.mxu0 0
        %786 = vmatmul.mubr.bf16.gmra.mxu0 %v748
        %v787 = vpop.f32.mrf.mxu0
        %v788 = vadd.f32 0.0, %v787
        %v789 = vpop.f32.mrf.mxu0
        %v790 = vpop.f32.mrf.mxu0
        %v791 = vpop.f32.mrf.mxu0
        %792 = vdwg.mxu0
        %v793 = vsel %vm700, %v742, -inf
        %794 = vmax.xlane.f32.xlu0 %v793
        %v795 = vpop.xlane.xlu0 %794
        %v796 = vsel %vm700, %v788, -inf
        %797 = vmax.xlane.f32.xlu0 %v796
        %v798 = vpop.xlane.xlu0 %797
        %v799 = vsub.f32 %v742, %v795
        %v800 = vsub.f32 %v788, %v798
        %v801 = vmul.f32 %v799, 1.442695
        %v802 = vpow.pop %v801
        %v803 = vmul.f32 %v800, 1.442695
        %v804 = vpow.pop %v803
        %v805 = vsel %vm700, %v802, 0.0
        %806 = vadd.xlane.f32.xlu0 %v805
        %v807 = vpop.xlane.xlu0 %806
        %v808 = vsel %vm700, %v804, 0.0
        %809 = vadd.xlane.f32.xlu0 %v808
        %v810 = vpop.xlane.xlu0 %809
        %v811 = vrcp.pop %v807
        %v812 = vrcp.pop %v810
        %v813 = vmul.f32 %v802, %v811
        %v814 = vmul.f32 %v804, %v812
        %815 = vst.msk [vmem:[%s402] sm:$0xff] %vm700, %v813
        %816 = vst.msk [vmem:[%s402 + $0x8] sm:$0xff] %vm700, %v814
        %v817 = vpack.c.bf16 %v813, %v813
        %v818 = vpack.c.bf16 %v814, %v814
        %v820 = vsel %vm700, %v817, 0
        %vm822 = vcmask 1043456
        %v824 = vsel %vm822, %v698, 0
        %826 = vmatprep.subr.bf16.mxu0 0
        %827 = vmatpush1.bf16.msra.mxu0 0
        %828 = vmatprep.subr.bf16.mxu0 0
        %829 = vmatpush1.bf16.msra.mxu0 0
        %830 = vmatprep.subr.bf16.mxu0 0
        %831 = vmatpush1.bf16.msra.mxu0 0
        %832 = vmatprep.subr.bf16.mxu0 0
        %833 = vmatpush1.bf16.msra.mxu0 0
        %834 = vmatprep.subr.bf16.mxu0 0
        %835 = vmatpush1.bf16.msra.mxu0 0
        %836 = vmatprep.subr.bf16.mxu0 0
        %837 = vmatpush1.bf16.msra.mxu0 0
        %838 = vmatprep.subr.bf16.mxu0 0
        %839 = vmatpush1.bf16.msra.mxu0 0
        %840 = vmatprep.subr.bf16.mxu0 0
        %841 = vmatpush1.bf16.msra.mxu0 %v824
        %842 = vmatprep.subr.bf16.mxu0 0
        %843 = vmatpush2.bf16.msra.mxu0 0
        %844 = vmatprep.subr.bf16.mxu0 0
        %845 = vmatpush2.bf16.msra.mxu0 0
        %846 = vmatprep.subr.bf16.mxu0 0
        %847 = vmatpush2.bf16.msra.mxu0 0
        %848 = vmatprep.subr.bf16.mxu0 0
        %849 = vmatpush2.bf16.msra.mxu0 0
        %850 = vmatprep.subr.bf16.mxu0 0
        %851 = vmatpush2.bf16.msra.mxu0 0
        %852 = vmatprep.subr.bf16.mxu0 0
        %853 = vmatpush2.bf16.msra.mxu0 0
        %854 = vmatprep.subr.bf16.mxu0 0
        %855 = vmatpush2.bf16.msra.mxu0 0
        %856 = vmatprep.subr.bf16.mxu0 0
        %857 = vmatpush2.bf16.msra.mxu0 0
        %858 = vmatprep.mubr.bf16.mxu0 0
        %859 = vmatmul.mubr.bf16.gmra.mxu0 %v820
        %v860 = vpop.f32.mrf.mxu0
        %v861 = vadd.f32 0.0, %v860
        %v862 = vpop.f32.mrf.mxu0
        %v863 = vpop.f32.mrf.mxu0
        %v864 = vpop.f32.mrf.mxu0
        %865 = vdwg.mxu0
        %v867 = vsel %vm700, %v818, 0
        %v870 = vsel %vm822, %v699, 0
        %872 = vmatprep.subr.bf16.mxu0 0
        %873 = vmatpush1.bf16.msra.mxu0 0
        %874 = vmatprep.subr.bf16.mxu0 0
        %875 = vmatpush1.bf16.msra.mxu0 0
        %876 = vmatprep.subr.bf16.mxu0 0
        %877 = vmatpush1.bf16.msra.mxu0 0
        %878 = vmatprep.subr.bf16.mxu0 0
        %879 = vmatpush1.bf16.msra.mxu0 0
        %880 = vmatprep.subr.bf16.mxu0 0
        %881 = vmatpush1.bf16.msra.mxu0 0
        %882 = vmatprep.subr.bf16.mxu0 0
        %883 = vmatpush1.bf16.msra.mxu0 0
        %884 = vmatprep.subr.bf16.mxu0 0
        %885 = vmatpush1.bf16.msra.mxu0 0
        %886 = vmatprep.subr.bf16.mxu0 0
        %887 = vmatpush1.bf16.msra.mxu0 %v870
        %888 = vmatprep.subr.bf16.mxu0 0
        %889 = vmatpush2.bf16.msra.mxu0 0
        %890 = vmatprep.subr.bf16.mxu0 0
        %891 = vmatpush2.bf16.msra.mxu0 0
        %892 = vmatprep.subr.bf16.mxu0 0
        %893 = vmatpush2.bf16.msra.mxu0 0
        %894 = vmatprep.subr.bf16.mxu0 0
        %895 = vmatpush2.bf16.msra.mxu0 0
        %896 = vmatprep.subr.bf16.mxu0 0
        %897 = vmatpush2.bf16.msra.mxu0 0
        %898 = vmatprep.subr.bf16.mxu0 0
        %899 = vmatpush2.bf16.msra.mxu0 0
        %900 = vmatprep.subr.bf16.mxu0 0
        %901 = vmatpush2.bf16.msra.mxu0 0
        %902 = vmatprep.subr.bf16.mxu0 0
        %903 = vmatpush2.bf16.msra.mxu0 0
        %904 = vmatprep.mubr.bf16.mxu0 0
        %905 = vmatmul.mubr.bf16.gmra.mxu0 %v867
        %v906 = vpop.f32.mrf.mxu0
        %v907 = vadd.f32 0.0, %v906
        %v908 = vpop.f32.mrf.mxu0
        %v909 = vpop.f32.mrf.mxu0
        %v910 = vpop.f32.mrf.mxu0
        %911 = vdwg.mxu0
        %v912 = vld [vmem:[#allocation3] sm:$0xff]
        %v913 = vld [vmem:[#allocation3 + $0x8] sm:$0xff]
        %v914 = vpack.c.bf16 %v907, %v861
        %v916 = vsel %vm700, %v914, 0
        %v919 = vsel %vm822, %v511, 0
        %921 = vmatprep.subr.bf16.mxu0 0
        %922 = vmatpush1.bf16.msra.mxu0 0
        %923 = vmatprep.subr.bf16.mxu0 0
        %924 = vmatpush1.bf16.msra.mxu0 0
        %925 = vmatprep.subr.bf16.mxu0 0
        %926 = vmatpush1.bf16.msra.mxu0 0
        %927 = vmatprep.subr.bf16.mxu0 0
        %928 = vmatpush1.bf16.msra.mxu0 0
        %929 = vmatprep.subr.bf16.mxu0 0
        %930 = vmatpush1.bf16.msra.mxu0 0
        %931 = vmatprep.subr.bf16.mxu0 0
        %932 = vmatpush1.bf16.msra.mxu0 0
        %933 = vmatprep.subr.bf16.mxu0 0
        %934 = vmatpush1.bf16.msra.mxu0 0
        %935 = vmatprep.subr.bf16.mxu0 0
        %936 = vmatpush1.bf16.msra.mxu0 %v919
        %937 = vmatprep.subr.bf16.mxu0 0
        %938 = vmatpush2.bf16.msra.mxu0 0
        %939 = vmatprep.subr.bf16.mxu0 0
        %940 = vmatpush2.bf16.msra.mxu0 0
        %941 = vmatprep.subr.bf16.mxu0 0
        %942 = vmatpush2.bf16.msra.mxu0 0
        %943 = vmatprep.subr.bf16.mxu0 0
        %944 = vmatpush2.bf16.msra.mxu0 0
        %945 = vmatprep.subr.bf16.mxu0 0
        %946 = vmatpush2.bf16.msra.mxu0 0
        %947 = vmatprep.subr.bf16.mxu0 0
        %948 = vmatpush2.bf16.msra.mxu0 0
        %949 = vmatprep.subr.bf16.mxu0 0
        %950 = vmatpush2.bf16.msra.mxu0 0
        %951 = vmatprep.subr.bf16.mxu0 0
        %952 = vmatpush2.bf16.msra.mxu0 0
        %953 = vmatprep.mubr.bf16.mxu0 0
        %954 = vmatmul.mubr.bf16.gmra.mxu0 %v916
        %v955 = vpop.f32.mrf.mxu0
        %v956 = vadd.f32 0.0, %v955
        %v957 = vpop.f32.mrf.mxu0
        %v958 = vpop.f32.mrf.mxu0
        %v959 = vadd.f32 0.0, %v958
        %v960 = vpop.f32.mrf.mxu0
        %961 = vdwg.mxu0
        %v962 = vadd.f32 %v912, %v956
        %v963 = vadd.f32 %v913, %v959
        %964 = vst.msk [vmem:[#allocation3] sm:$0xff] %vm529, %v962
        %965 = vst.msk [vmem:[#allocation3 + $0x8] sm:$0xff] %vm529, %v963
        %s966 = sand.u32 %s266, 1
        %s967 = scalar_lea.sflag [#allocation6], %s966
        %s968 = sand.u32 %s266, 1
        %s969 = smul.addr %s968, 16
        %s970 = scalar_lea.vmem [#allocation5], %s969
        // Predicated region
        $region57: #{tpu_custom_call.1} parent=51 // pred_check
          %p971 = pneg %p248
        $region58: #{tpu_custom_call.1} parent=51 // pred_check_branch
          %973 = sbr.rel (%p971) target = $region60
        $region59: #{tpu_custom_call.1} parent=51 // pred_region
          %s974 = smul.u32 2, %s29
          %s976 = ssub.s32 256, 256
          %977 = vsyncadd [#allocation4], %s976
          %s978 = smul.addr %s974, 128
          %s979 = scalar_lea.hbm %s8, %s978
          %s980 = sshll.u32 [#allocation3], 4
          %s981 = int_to_ptr.vmem [resolvable:$true] %s980
          %986 = dma.vmem_to_hbm [thread:$0]  %s981, 256, %s979, [#allocation4], 128, 128, 8
        $region60: #{tpu_custom_call.1} parent=51 // pred_fallthru
          _
        // Predicated region
        $region61: #{tpu_custom_call.1} parent=51 // pred_check
          %p987 = pneg %p276
        $region62: #{tpu_custom_call.1} parent=51 // pred_check_branch
          %989 = sbr.rel (%p987) target = $region64
        $region63: #{tpu_custom_call.1} parent=51 // pred_region
          %s990 = smul.u32 2, %s29
          %s992 = ssub.s32 256, 256
          %993 = vsyncadd %s967, %s992
          %s994 = smul.addr %s990, 4
          %s995 = sadd.s32 %s30, %s994
          %s996 = smul.addr %s995, 128
          %s997 = scalar_lea.hbm %s9, %s996
          %s998 = sshll.u32 %s970, 4
          %s999 = int_to_ptr.vmem [resolvable:$true] %s998
          %1004 = dma.vmem_to_hbm [thread:$0]  %s999, 256, %s997, %s967, 128, 512, 8
        $region64: #{tpu_custom_call.1} parent=51 // pred_fallthru
          _
        // Predicated region
        $region65: #{tpu_custom_call.1} parent=51 // pred_check
          %p1005 = pneg %p248
        $region66: #{tpu_custom_call.1} parent=51 // pred_check_branch
          %1007 = sbr.rel (%p1005) target = $region68
        $region67: #{tpu_custom_call.1} parent=51 // pred_region
          %1008 = dma.done [#allocation4], 256
        $region68: #{tpu_custom_call.1} parent=51 // pred_fallthru
          _
      $region52: #{tpu_custom_call.1} parent=5 // pred_fallthru
        _
      %p1009 = scmp.le.s32.totalorder 2, %s20
      // Predicated region
      $region69: #{tpu_custom_call.1} parent=5 // pred_check
        %p1010 = pneg %p1009
      $region70: #{tpu_custom_call.1} parent=5 // pred_check_branch
        %1012 = sbr.rel (%p1010) target = $region72
      $region71: #{tpu_custom_call.1} parent=5 // pred_region
        %s1013 = ssub.s32 %s20, 2
        // Predicated region
        $region73: #{tpu_custom_call.1} parent=71 // pred_check
          %p1014 = pneg %p282
        $region74: #{tpu_custom_call.1} parent=71 // pred_check_branch
          %1016 = sbr.rel (%p1014) target = $region76
        $region75: #{tpu_custom_call.1} parent=71 // pred_region
          %s1017 = sand.u32 %s267, 1
          %s1018 = scalar_lea.sflag [#allocation6], %s1017
          %s1019 = sand.u32 %s267, 1
          %s1020 = smul.addr %s1019, 16
          %s1021 = scalar_lea.vmem [#allocation5], %s1020
          %1022 = dma.done %s1018, 256
        $region76: #{tpu_custom_call.1} parent=71 // pred_fallthru
          _
      $region72: #{tpu_custom_call.1} parent=5 // pred_fallthru
        _
    $region6: #{tpu_custom_call.1} parent=1 // loop_footer
      %s24 = sadd.s32 1, %s20
    $region7: #{tpu_custom_call.1} parent=1 // loop_footer_branch
      %19 = sbr.rel target = $region3
    $region8: #{tpu_custom_call.1} parent=1 // loop_exit
      _
    %1023 = vsyncpa [#allocation4], 1
    %s1024 = scalar_lea.sflag [#allocation4], 1
    %1025 = vsyncpa %s1024, 1
    %1026 = vsyncpa [#allocation6], 1
    %s1027 = scalar_lea.sflag [#allocation6], 1
    %1028 = vsyncpa %s1027, 1

</llo_original>
